<compile_context>
chip_gen: v7x
topology: tpu7x:2x2x1
jax: 0.10.0
libtpu: 0.0.40
codegen_flags: <defaults>
</compile_context>

<pallas_src>
import functools

import jax
import jax.numpy as jnp
from jax.experimental import pallas as pl
from jax.experimental.pallas import tpu as pltpu


def _round_up(x, m):
    return (x + m - 1) // m * m


def rnn2_kernel(x20_ref, x5_ref, x2_ref, x1_ref, xf5_ref, xf3_ref, xf1_ref,
                w_gate_ref, b_gate_ref, w_out_ref, b_out_ref, out_ref,
                *, hidden_dim, widths):
    H = hidden_dim

    # Fused pre-LSTM path: 7 small MXU dots against static row-slices of
    # W_fused, accumulated together with the fused bias (broadcast add).
    x_refs = (x20_ref, x5_ref, x2_ref, x1_ref, xf5_ref, xf3_ref, xf1_ref)
    gates = b_gate_ref[...]                     # (1, 4H) broadcasts over rows
    off = 0
    for x_ref, w in zip(x_refs, widths):
        gates = gates + jnp.dot(x_ref[...], w_gate_ref[off:off + w, :],
                                preferred_element_type=jnp.float32)
        off += w

    # Full-tile nonlinearities (EUP slot).  At H = 32 (4H = 128 lanes) this is
    # the cheapest form; only for H >= 128 would per-gate 128-lane slices pay.
    sg = jax.nn.sigmoid(gates)   # lanes [0,H): sigmoid(i)   [3H,4H): sigmoid(o)
    th = jnp.tanh(gates)         # lanes [2H,3H): tanh(g)

    # Gate alignment with XLU lane rotations (no iota/where selectors).
    #  - roll by 2H is a half-width rotation -> direction-symmetric: lanes
    #    [0,H) receive tanh(g) under either rotate convention.
    #  - roll by H lands sigmoid(o) on lanes [0,H) under either convention
    #    because the (dead) f-gate columns were overwritten with the o-gate
    #    columns on the host.
    g_al = pltpu.roll(th, shift=2 * H, axis=1)
    o_al = pltpu.roll(sg, shift=H, axis=1)

    # LSTM step with h0 = c0 = 0: c = i*g (the f-gate term is identically 0),
    # h = o * tanh(c).  Lanes [H,4H) hold bounded garbage that is cancelled by
    # the exactly-zero rows [H,4H) of W_out below.
    c = sg * g_al
    h = o_al * jnp.tanh(c)

    # Output projection; lane-dense (128-multiple) store.
    out_ref[...] = (jnp.dot(h, w_out_ref[...],
                            preferred_element_type=jnp.float32) + b_out_ref[...])


def fuse_params(p, *, embedding_dim, hidden_dim, eps=1e-5):
    """Host-side algebraic fusion of BN + embeddings + LSTM input projection."""
    E = embedding_dim
    H = hidden_dim
    G = 4 * H
    w_ih_t = p["w_ih_t"]                                    # (7E, 4H)

    blocks, shifts = [], []
    for k in range(7):
        emb = p["item_emb"] if k < 4 else p["feat_emb"]     # (Wk, E)
        scale = p["bn_gamma"][k] * jax.lax.rsqrt(p["bn_var"][k] + eps)   # (E,)
        shift = p["bn_beta"][k] - p["bn_mean"][k] * scale                # (E,)
        blocks.append((emb * scale[None, :]) @ w_ih_t[k * E:(k + 1) * E, :])
        shifts.append(shift)

    w_gate = jnp.concatenate(blocks, axis=0)                # (K, 4H), K = sum widths
    b_gate = jnp.concatenate(shifts)[None, :] @ w_ih_t + p["b_gate"]    # (1, 4H)

    # The f-gate is dead (c0 == 0): overwrite its columns with the o-gate
    # columns so pltpu.roll(sigmoid(gates), H) yields sigmoid(o) on lanes
    # [0,H) regardless of rotate-direction convention.
    w_gate = w_gate.at[:, H:2 * H].set(w_gate[:, 3 * H:4 * H])
    b_gate = b_gate.at[:, H:2 * H].set(b_gate[:, 3 * H:4 * H])

    num_items = p["w_out_t"].shape[1]
    n_pad = _round_up(num_items, 128)                       # lane-dense output
    # Rows [H, 4H) MUST stay exactly zero: they cancel the rotated garbage
    # lanes of h.  Never fold b_out into these rows.
    w_out = jnp.zeros((G, n_pad), jnp.float32).at[:H, :num_items].set(p["w_out_t"])
    b_out = jnp.zeros((1, n_pad), jnp.float32).at[:, :num_items].set(p["b_out"])

    return {"w_gate": w_gate, "b_gate": b_gate, "w_out": w_out, "b_out": b_out,
            "K": int(w_gate.shape[0]), "num_items": num_items, "n_pad": n_pad}


def rnn2_forward(mats, fused, *, hidden_dim, batch_block=512):
    """mats: tuple of 7 (B, width) arrays in [item_last_20, _5, _2, _1,
    item_last_5_feats, _3_feats, _1_feats] order.  `fused` from fuse_params."""
    B = mats[0].shape[0]
    H = hidden_dim
    G = 4 * H
    K = fused["K"]
    n_pad = fused["n_pad"]
    widths = tuple(int(m.shape[-1]) for m in mats)
    assert sum(widths) == K

    # Batch blocking: one resident block for small batches; 512-row blocks on
    # a "parallel" grid axis for large ones (amortizes the ~0.35us per-step
    # overhead; both v7x TensorCores engage once B > 2*batch_block).
    if B <= batch_block:
        bb = _round_up(max(B, 8), 8)
    else:
        bb = batch_block
    b_pad = _round_up(B, bb)

    xs = []
    for m in mats:
        m = m.astype(jnp.float32)
        if b_pad != B:                     # pad (copy) only when unavoidable
            m = jnp.pad(m, ((0, b_pad - B), (0, 0)))
        xs.append(m)

    kernel = functools.partial(rnn2_kernel, hidden_dim=H, widths=widths)

    def batch_spec(width):
        return pl.BlockSpec((bb, width), lambda i: (i, 0))

    const = lambda i: (0, 0)
    # NOTE: for production-scale num_items (n_pad >> 128) add a second grid
    # axis tiling n_pad (stash h via pl.when(n == 0) in VMEM scratch) and set
    # vmem_limit_bytes; unnecessary at these shapes.
    out = pl.pallas_call(
        kernel,
        out_shape=jax.ShapeDtypeStruct((b_pad, n_pad), jnp.float32),
        grid=(b_pad // bb,),
        in_specs=[batch_spec(w) for w in widths] + [
            pl.BlockSpec((K, G), const),        # W_fused (grid-invariant)
            pl.BlockSpec((1, G), const),        # b_fused
            pl.BlockSpec((G, n_pad), const),    # W_out   (rows [H,4H) == 0)
            pl.BlockSpec((1, n_pad), const),    # b_out
        ],
        out_specs=pl.BlockSpec((bb, n_pad), lambda i: (i, 0)),
        compiler_params=pltpu.CompilerParams(
            dimension_semantics=("parallel",)),
    )(*xs, fused["w_gate"], fused["b_gate"], fused["w_out"], fused["b_out"])

    return out[:B, :fused["num_items"]]


def rnn2_reference(mats, p, hidden_dim):
    """Plain-JAX (unfused) reference for validation."""
    H = hidden_dim
    eps = 1e-5

    def bn(x, k):
        return ((x - p["bn_mean"][k]) * jax.lax.rsqrt(p["bn_var"][k] + eps)
                * p["bn_gamma"][k] + p["bn_beta"][k])

    hs = []
    for k in range(4):
        hs.append(bn(mats[k] @ p["item_emb"], k))
    for j in range(3):
        hs.append(bn(mats[4 + j] @ p["feat_emb"], 4 + j))
    x = jnp.concatenate(hs, axis=-1)
    gates = x @ p["w_ih_t"] + p["b_gate"]
    i = jax.nn.sigmoid(gates[:, :H])
    g = jnp.tanh(gates[:, 2 * H:3 * H])
    o = jax.nn.sigmoid(gates[:, 3 * H:])
    h = o * jnp.tanh(i * g)
    return h @ p["w_out_t"] + p["b_out"]


if __name__ == "__main__":
    # Small deterministic shapes consistent with the module's constructor.
    B = 8            # batch
    E = 16           # embedding_dim
    H = 32           # hidden_dim   (4H = 128 -> gate tile is exactly lane-dense)
    NUM_ITEMS = 64   # num_items    (width of the 4 item matrices & output)
    NUM_FEATS = 48   # num_feats    (width of the 3 feat matrices)

    key = jax.random.PRNGKey(0)
    ks = jax.random.split(key, 20)

    # Inputs: 4 item matrices (B, NUM_ITEMS) + 3 feat matrices (B, NUM_FEATS).
    mats = (
        jax.random.normal(ks[0], (B, NUM_ITEMS), jnp.float32),   # item_last_20
        jax.random.normal(ks[1], (B, NUM_ITEMS), jnp.float32),   # item_last_5
        jax.random.normal(ks[2], (B, NUM_ITEMS), jnp.float32),   # item_last_2
        jax.random.normal(ks[3], (B, NUM_ITEMS), jnp.float32),   # item_last_1
        jax.random.normal(ks[4], (B, NUM_FEATS), jnp.float32),   # item_last_5_feats
        jax.random.normal(ks[5], (B, NUM_FEATS), jnp.float32),   # item_last_3_feats
        jax.random.normal(ks[6], (B, NUM_FEATS), jnp.float32),   # item_last_1_feats
    )

    # Parameters (deterministic, matching the module's __init__ shapes).
    # The PyTorch forward re-draws the embedding tables ~N(0, 0.001) each call;
    # here we draw them once, deterministically.
    lstm_bound = 1.0 / jnp.sqrt(H)
    lin_bound = 1.0 / jnp.sqrt(H)
    params = {
        "item_emb": 0.001 * jax.random.normal(ks[7], (NUM_ITEMS, E), jnp.float32),
        "feat_emb": 0.001 * jax.random.normal(ks[8], (NUM_FEATS, E), jnp.float32),
        # eval-mode BatchNorm1d running stats / affine, one row per branch
        "bn_gamma": 1.0 + 0.1 * jax.random.normal(ks[9], (7, E), jnp.float32),
        "bn_beta": 0.1 * jax.random.normal(ks[10], (7, E), jnp.float32),
        "bn_mean": 0.05 * jax.random.normal(ks[11], (7, E), jnp.float32),
        "bn_var": jnp.abs(1.0 + 0.1 * jax.random.normal(ks[12], (7, E), jnp.float32)),
        # LSTM(E*7 -> H): W_ih is (4H, 7E) in PyTorch; we pass its transpose.
        "w_ih_t": jax.random.uniform(ks[13], (7 * E, 4 * H), jnp.float32,
                                     minval=-lstm_bound, maxval=lstm_bound),
        # combined bias b_ih + b_hh
        "b_gate": jax.random.uniform(ks[14], (1, 4 * H), jnp.float32,
                                     minval=-2 * lstm_bound, maxval=2 * lstm_bound),
        # Linear(H -> num_items): weight (num_items, H) in PyTorch; pass transpose.
        "w_out_t": jax.random.uniform(ks[15], (H, NUM_ITEMS), jnp.float32,
                                      minval=-lin_bound, maxval=lin_bound),
        "b_out": jax.random.uniform(ks[16], (1, NUM_ITEMS), jnp.float32,
                                    minval=-lin_bound, maxval=lin_bound),
    }

    fused = fuse_params(params, embedding_dim=E, hidden_dim=H)
    out = rnn2_forward(mats, fused, hidden_dim=H)
    out = jax.block_until_ready(out)

    ref = rnn2_reference(mats, params, H)
    assert out.shape == (B, NUM_ITEMS), out.shape
    assert jnp.allclose(out, ref, rtol=1e-4, atol=1e-4), \
        float(jnp.max(jnp.abs(out - ref)))

    # TODO(synk): Dropout/BatchNorm are implemented in eval (inference) mode;
    # training-mode stochastic dropout, batch-statistics BN, and the
    # per-forward re-sampling of the embedding tables are not modeled.
    print("KERNEL_OK")
</pallas_src>

<mosaic_0001>
module attributes {stable_mosaic.version = 11 : i64} {
  func.func @rnn2_kernel(%arg0: i32, %arg1: memref<8x64xf32, #tpu.memory_space<vmem>>, %arg2: memref<8x64xf32, #tpu.memory_space<vmem>>, %arg3: memref<8x64xf32, #tpu.memory_space<vmem>>, %arg4: memref<8x64xf32, #tpu.memory_space<vmem>>, %arg5: memref<8x48xf32, #tpu.memory_space<vmem>>, %arg6: memref<8x48xf32, #tpu.memory_space<vmem>>, %arg7: memref<8x48xf32, #tpu.memory_space<vmem>>, %arg8: memref<400x128xf32, #tpu.memory_space<vmem>>, %arg9: memref<1x128xf32, #tpu.memory_space<vmem>>, %arg10: memref<128x128xf32, #tpu.memory_space<vmem>>, %arg11: memref<1x128xf32, #tpu.memory_space<vmem>>, %arg12: memref<8x128xf32, #tpu.memory_space<vmem>>) attributes {dimension_semantics = [#tpu.dimension_semantics<parallel>], iteration_bounds = array<i64: 1>, scalar_prefetch = 0 : i64, scratch_operands = 0 : i64, tpu.core_type = #tpu.core_type<tc>, window_params = [{transform_indices = @transform_0, window_bounds = array<i64: 8, 64>}, {transform_indices = @transform_1, window_bounds = array<i64: 8, 64>}, {transform_indices = @transform_2, window_bounds = array<i64: 8, 64>}, {transform_indices = @transform_3, window_bounds = array<i64: 8, 64>}, {transform_indices = @transform_4, window_bounds = array<i64: 8, 48>}, {transform_indices = @transform_5, window_bounds = array<i64: 8, 48>}, {transform_indices = @transform_6, window_bounds = array<i64: 8, 48>}, {pipeline_mode = #tpu.pipeline_mode<synchronous>, transform_indices = @transform_7, window_bounds = array<i64: 400, 128>}, {pipeline_mode = #tpu.pipeline_mode<synchronous>, transform_indices = @transform_8, window_bounds = array<i64: 1, 128>}, {pipeline_mode = #tpu.pipeline_mode<synchronous>, transform_indices = @transform_9, window_bounds = array<i64: 128, 128>}, {pipeline_mode = #tpu.pipeline_mode<synchronous>, transform_indices = @transform_10, window_bounds = array<i64: 1, 128>}, {transform_indices = @transform_11, window_bounds = array<i64: 8, 128>}]} {
    %c0 = arith.constant 0 : index
    %c0_0 = arith.constant 0 : index
    %0 = vector.load %arg9[%c0, %c0_0] : memref<1x128xf32, #tpu.memory_space<vmem>>, vector<1x128xf32>
    %c0_1 = arith.constant 0 : index
    %c0_2 = arith.constant 0 : index
    %1 = vector.load %arg1[%c0_1, %c0_2] : memref<8x64xf32, #tpu.memory_space<vmem>>, vector<8x64xf32>
    %c0_3 = arith.constant 0 : index
    %c0_4 = arith.constant 0 : index
    %2 = vector.load %arg8[%c0_3, %c0_4] : memref<400x128xf32, #tpu.memory_space<vmem>>, vector<64x128xf32>
    %cst = arith.constant dense<0.000000e+00> : vector<8x128xf32>
    %3 = tpu.matmul %1, %2, %cst {dimension_numbers = #tpu.dot_dimension_numbers<[1], [0], [0], [1], [0, 0, 1, 1], [], []>} : vector<8x64xf32>, vector<64x128xf32>, vector<8x128xf32> -> vector<8x128xf32>
    %4 = vector.broadcast %0 : vector<1x128xf32> to vector<8x128xf32>
    %5 = arith.addf %4, %3 : vector<8x128xf32>
    %c0_5 = arith.constant 0 : index
    %c0_6 = arith.constant 0 : index
    %6 = vector.load %arg2[%c0_5, %c0_6] : memref<8x64xf32, #tpu.memory_space<vmem>>, vector<8x64xf32>
    %c64 = arith.constant 64 : index
    %c0_7 = arith.constant 0 : index
    %7 = vector.load %arg8[%c64, %c0_7] : memref<400x128xf32, #tpu.memory_space<vmem>>, vector<64x128xf32>
    %cst_8 = arith.constant dense<0.000000e+00> : vector<8x128xf32>
    %8 = tpu.matmul %6, %7, %cst_8 {dimension_numbers = #tpu.dot_dimension_numbers<[1], [0], [0], [1], [0, 0, 1, 1], [], []>} : vector<8x64xf32>, vector<64x128xf32>, vector<8x128xf32> -> vector<8x128xf32>
    %9 = arith.addf %5, %8 : vector<8x128xf32>
    %c0_9 = arith.constant 0 : index
    %c0_10 = arith.constant 0 : index
    %10 = vector.load %arg3[%c0_9, %c0_10] : memref<8x64xf32, #tpu.memory_space<vmem>>, vector<8x64xf32>
    %c128 = arith.constant 128 : index
    %c0_11 = arith.constant 0 : index
    %11 = vector.load %arg8[%c128, %c0_11] : memref<400x128xf32, #tpu.memory_space<vmem>>, vector<64x128xf32>
    %cst_12 = arith.constant dense<0.000000e+00> : vector<8x128xf32>
    %12 = tpu.matmul %10, %11, %cst_12 {dimension_numbers = #tpu.dot_dimension_numbers<[1], [0], [0], [1], [0, 0, 1, 1], [], []>} : vector<8x64xf32>, vector<64x128xf32>, vector<8x128xf32> -> vector<8x128xf32>
    %13 = arith.addf %9, %12 : vector<8x128xf32>
    %c0_13 = arith.constant 0 : index
    %c0_14 = arith.constant 0 : index
    %14 = vector.load %arg4[%c0_13, %c0_14] : memref<8x64xf32, #tpu.memory_space<vmem>>, vector<8x64xf32>
    %c192 = arith.constant 192 : index
    %c0_15 = arith.constant 0 : index
    %15 = vector.load %arg8[%c192, %c0_15] : memref<400x128xf32, #tpu.memory_space<vmem>>, vector<64x128xf32>
    %cst_16 = arith.constant dense<0.000000e+00> : vector<8x128xf32>
    %16 = tpu.matmul %14, %15, %cst_16 {dimension_numbers = #tpu.dot_dimension_numbers<[1], [0], [0], [1], [0, 0, 1, 1], [], []>} : vector<8x64xf32>, vector<64x128xf32>, vector<8x128xf32> -> vector<8x128xf32>
    %17 = arith.addf %13, %16 : vector<8x128xf32>
    %c0_17 = arith.constant 0 : index
    %c0_18 = arith.constant 0 : index
    %18 = vector.load %arg5[%c0_17, %c0_18] : memref<8x48xf32, #tpu.memory_space<vmem>>, vector<8x48xf32>
    %c256 = arith.constant 256 : index
    %c0_19 = arith.constant 0 : index
    %19 = vector.load %arg8[%c256, %c0_19] : memref<400x128xf32, #tpu.memory_space<vmem>>, vector<48x128xf32>
    %cst_20 = arith.constant dense<0.000000e+00> : vector<8x128xf32>
    %20 = tpu.matmul %18, %19, %cst_20 {dimension_numbers = #tpu.dot_dimension_numbers<[1], [0], [0], [1], [0, 0, 1, 1], [], []>} : vector<8x48xf32>, vector<48x128xf32>, vector<8x128xf32> -> vector<8x128xf32>
    %21 = arith.addf %17, %20 : vector<8x128xf32>
    %c0_21 = arith.constant 0 : index
    %c0_22 = arith.constant 0 : index
    %22 = vector.load %arg6[%c0_21, %c0_22] : memref<8x48xf32, #tpu.memory_space<vmem>>, vector<8x48xf32>
    %c304 = arith.constant 304 : index
    %c0_23 = arith.constant 0 : index
    %23 = vector.load %arg8[%c304, %c0_23] : memref<400x128xf32, #tpu.memory_space<vmem>>, vector<48x128xf32>
    %cst_24 = arith.constant dense<0.000000e+00> : vector<8x128xf32>
    %24 = tpu.matmul %22, %23, %cst_24 {dimension_numbers = #tpu.dot_dimension_numbers<[1], [0], [0], [1], [0, 0, 1, 1], [], []>} : vector<8x48xf32>, vector<48x128xf32>, vector<8x128xf32> -> vector<8x128xf32>
    %25 = arith.addf %21, %24 : vector<8x128xf32>
    %c0_25 = arith.constant 0 : index
    %c0_26 = arith.constant 0 : index
    %26 = vector.load %arg7[%c0_25, %c0_26] : memref<8x48xf32, #tpu.memory_space<vmem>>, vector<8x48xf32>
    %c352 = arith.constant 352 : index
    %c0_27 = arith.constant 0 : index
    %27 = vector.load %arg8[%c352, %c0_27] : memref<400x128xf32, #tpu.memory_space<vmem>>, vector<48x128xf32>
    %cst_28 = arith.constant dense<0.000000e+00> : vector<8x128xf32>
    %28 = tpu.matmul %26, %27, %cst_28 {dimension_numbers = #tpu.dot_dimension_numbers<[1], [0], [0], [1], [0, 0, 1, 1], [], []>} : vector<8x48xf32>, vector<48x128xf32>, vector<8x128xf32> -> vector<8x128xf32>
    %29 = arith.addf %25, %28 : vector<8x128xf32>
    %30 = arith.negf %29 : vector<8x128xf32>
    %31 = math.exp %30 : vector<8x128xf32>
    %cst_29 = arith.constant 1.000000e+00 : f32
    %32 = vector.broadcast %cst_29 : f32 to vector<8x128xf32>
    %33 = arith.addf %32, %31 : vector<8x128xf32>
    %34 = arith.divf %32, %33 : vector<8x128xf32>
    %35 = math.tanh %29 : vector<8x128xf32>
    %c64_i32 = arith.constant 64 : i32
    %36 = tpu.dynamic_rotate %35 by %c64_i32 dim 1 : vector<8x128xf32>, i32 -> vector<8x128xf32>
    %c32_i32 = arith.constant 32 : i32
    %37 = tpu.dynamic_rotate %34 by %c32_i32 dim 1 : vector<8x128xf32>, i32 -> vector<8x128xf32>
    %38 = arith.mulf %34, %36 : vector<8x128xf32>
    %39 = math.tanh %38 : vector<8x128xf32>
    %40 = arith.mulf %37, %39 : vector<8x128xf32>
    %c0_30 = arith.constant 0 : index
    %c0_31 = arith.constant 0 : index
    %41 = vector.load %arg10[%c0_30, %c0_31] : memref<128x128xf32, #tpu.memory_space<vmem>>, vector<128x128xf32>
    %cst_32 = arith.constant dense<0.000000e+00> : vector<8x128xf32>
    %42 = tpu.matmul %40, %41, %cst_32 {dimension_numbers = #tpu.dot_dimension_numbers<[1], [0], [0], [1], [0, 0, 1, 1], [], []>} : vector<8x128xf32>, vector<128x128xf32>, vector<8x128xf32> -> vector<8x128xf32>
    %c0_33 = arith.constant 0 : index
    %c0_34 = arith.constant 0 : index
    %43 = vector.load %arg11[%c0_33, %c0_34] : memref<1x128xf32, #tpu.memory_space<vmem>>, vector<1x128xf32>
    %44 = vector.broadcast %43 : vector<1x128xf32> to vector<8x128xf32>
    %45 = arith.addf %42, %44 : vector<8x128xf32>
    %c0_35 = arith.constant 0 : index
    %c0_36 = arith.constant 0 : index
    %46 = vector.load %arg12[%c0_35, %c0_36] : memref<8x128xf32, #tpu.memory_space<vmem>>, vector<8x128xf32>
    tpu.vector_store %arg12[%c0_35, %c0_36], %45 {strides = array<i32>} : memref<8x128xf32, #tpu.memory_space<vmem>>, vector<8x128xf32>,
    return
  }
  func.func @transform_0(%arg0: i32) -> (i32, i32) {
    %c0_i32 = arith.constant 0 : i32
    %c0_i32_0 = arith.constant 0 : i32
    return %arg0, %c0_i32 : i32, i32
  }
  func.func @transform_1(%arg0: i32) -> (i32, i32) {
    %c0_i32 = arith.constant 0 : i32
    %c0_i32_0 = arith.constant 0 : i32
    return %arg0, %c0_i32 : i32, i32
  }
  func.func @transform_2(%arg0: i32) -> (i32, i32) {
    %c0_i32 = arith.constant 0 : i32
    %c0_i32_0 = arith.constant 0 : i32
    return %arg0, %c0_i32 : i32, i32
  }
  func.func @transform_3(%arg0: i32) -> (i32, i32) {
    %c0_i32 = arith.constant 0 : i32
    %c0_i32_0 = arith.constant 0 : i32
    return %arg0, %c0_i32 : i32, i32
  }
  func.func @transform_4(%arg0: i32) -> (i32, i32) {
    %c0_i32 = arith.constant 0 : i32
    %c0_i32_0 = arith.constant 0 : i32
    return %arg0, %c0_i32 : i32, i32
  }
  func.func @transform_5(%arg0: i32) -> (i32, i32) {
    %c0_i32 = arith.constant 0 : i32
    %c0_i32_0 = arith.constant 0 : i32
    return %arg0, %c0_i32 : i32, i32
  }
  func.func @transform_6(%arg0: i32) -> (i32, i32) {
    %c0_i32 = arith.constant 0 : i32
    %c0_i32_0 = arith.constant 0 : i32
    return %arg0, %c0_i32 : i32, i32
  }
  func.func @transform_7(%arg0: i32) -> (i32, i32) {
    %c0_i32 = arith.constant 0 : i32
    %c0_i32_0 = arith.constant 0 : i32
    %c0_i32_1 = arith.constant 0 : i32
    return %c0_i32, %c0_i32_0 : i32, i32
  }
  func.func @transform_8(%arg0: i32) -> (i32, i32) {
    %c0_i32 = arith.constant 0 : i32
    %c0_i32_0 = arith.constant 0 : i32
    %c0_i32_1 = arith.constant 0 : i32
    return %c0_i32, %c0_i32_0 : i32, i32
  }
  func.func @transform_9(%arg0: i32) -> (i32, i32) {
    %c0_i32 = arith.constant 0 : i32
    %c0_i32_0 = arith.constant 0 : i32
    %c0_i32_1 = arith.constant 0 : i32
    return %c0_i32, %c0_i32_0 : i32, i32
  }
  func.func @transform_10(%arg0: i32) -> (i32, i32) {
    %c0_i32 = arith.constant 0 : i32
    %c0_i32_0 = arith.constant 0 : i32
    %c0_i32_1 = arith.constant 0 : i32
    return %c0_i32, %c0_i32_0 : i32, i32
  }
  func.func @transform_11(%arg0: i32) -> (i32, i32) {
    %c0_i32 = arith.constant 0 : i32
    %c0_i32_0 = arith.constant 0 : i32
    return %arg0, %c0_i32 : i32, i32
  }
}

</mosaic_0001>

<llo_original>
// kernel: tpu_custom_call.1
$region0: #{tpu_custom_call.1}
  #allocation0 [shape = 'u32[]', space=smem, size = 0x4, offset = 0x4, fixed_abs, tag = 'smem constant byte address 0x4 - core index']
  #allocation1 [shape = 'u32[144,128]{1,0:T(1,128)}', space=vmem, size = 0x12000, scoped, tag = 'internal scratch']
  %s0 = inlined_call_operand.hbm [shape: f32[8,64], index: 0, kind: input, shape index: {}]
  %s1 = inlined_call_operand.hbm [shape: f32[8,64], index: 1, kind: input, shape index: {}]
  %s2 = inlined_call_operand.hbm [shape: f32[8,64], index: 2, kind: input, shape index: {}]
  %s3 = inlined_call_operand.vmem [shape: f32[8,64], index: 3, kind: input, shape index: {}]
  %s4 = inlined_call_operand.hbm [shape: f32[8,48], index: 4, kind: input, shape index: {}]
  %s5 = inlined_call_operand.vmem [shape: f32[8,48], index: 5, kind: input, shape index: {}]
  %s6 = inlined_call_operand.hbm [shape: f32[8,48], index: 6, kind: input, shape index: {}]
  %s7 = inlined_call_operand.hbm [shape: f32[400,128], index: 7, kind: input, shape index: {}]
  %s8 = inlined_call_operand.vmem [shape: f32[1,128], index: 8, kind: input, shape index: {}]
  %s9 = inlined_call_operand.hbm [shape: f32[128,128], index: 9, kind: input, shape index: {}]
  %s10 = inlined_call_operand.vmem [shape: f32[1,128], index: 10, kind: input, shape index: {}]
  %s11 = inlined_call_operand.hbm [shape: f32[8,128], index: 11, kind: output, shape index: {}]
  %s12 = sld [smem:[#allocation0]]
  $region82: #{tpu_custom_call.1} parent=0
    _
  %s14 = ssub.s32 1, %s12
  %s15 = scalar_select 0, %s14, %s12
  $region1: #{tpu_custom_call.1} parent=0
    #allocation2 [shape = 'u8[4096]{0}', space=vmem, size = 0x1000, scoped, tag = 'input window, operand 0, single buffered']
    #allocation3 [shape = 's32[1]{0}', space=sflag, size = 0x4, scoped, tag = 'scoped memory for tpu_custom_call.1']
    #allocation4 [shape = 's32[1]{0}', space=sflag, size = 0x4, scoped, tag = 'scoped memory for tpu_custom_call.1']
    #allocation5 [shape = 'u8[4096]{0}', space=vmem, size = 0x1000, scoped, tag = 'input window, operand 1, single buffered']
    #allocation6 [shape = 's32[1]{0}', space=sflag, size = 0x4, scoped, tag = 'scoped memory for tpu_custom_call.1']
    #allocation7 [shape = 'u8[4096]{0}', space=vmem, size = 0x1000, scoped, tag = 'input window, operand 2, single buffered']
    #allocation8 [shape = 'u8[4096]{0}', space=vmem, size = 0x1000, scoped, tag = 'input window, operand 4, single buffered']
    #allocation9 [shape = 's32[1]{0}', space=sflag, size = 0x4, scoped, tag = 'scoped memory for tpu_custom_call.1']
    #allocation10 [shape = 'u8[4096]{0}', space=vmem, size = 0x1000, scoped, tag = 'input window, operand 6, single buffered']
    #allocation11 [shape = 'u8[204800]{0}', space=vmem, size = 0x32000, scoped, tag = 'input window, operand 7, single buffered']
    #allocation12 [shape = 's32[1]{0}', space=sflag, size = 0x4, scoped, tag = 'scoped memory for tpu_custom_call.1']
    #allocation13 [shape = 'u8[65536]{0}', space=vmem, size = 0x10000, scoped, tag = 'input window, operand 9, single buffered']
    #allocation14 [shape = 'u8[4096]{0}', space=vmem, size = 0x1000, scoped, tag = 'output window, operand 0, single buffered']
    %16 = vsyncpa [#allocation3], 0
    %17 = vsyncpa [#allocation6], 0
    %18 = vsyncpa [#allocation9], 0
    %19 = vsyncpa [#allocation12], 0
    %20 = vsyncpa [#allocation4], 0
    // Predicated region
    $region2: #{tpu_custom_call.1} parent=1 // pred_check
      _
    $region3: #{tpu_custom_call.1} parent=1 // pred_check_branch
      %22 = sbr.rel (0) target = $region5
    $region4: #{tpu_custom_call.1} parent=1 // pred_region
      %s24 = ssub.s32 128, 128
      %25 = vsyncadd [#allocation3], %s24
      %s27 = sshll.u32 [#allocation2], 4
      %s28 = int_to_ptr.vmem [resolvable:$true] %s27
      %30 = dma.hbm_to_vmem [thread:$0]  %s0, 128, %s28, [#allocation3]
    $region5: #{tpu_custom_call.1} parent=1 // pred_fallthru
      _
    // Predicated region
    $region6: #{tpu_custom_call.1} parent=1 // pred_check
      _
    $region7: #{tpu_custom_call.1} parent=1 // pred_check_branch
      %32 = sbr.rel (0) target = $region9
    $region8: #{tpu_custom_call.1} parent=1 // pred_region
      %s34 = ssub.s32 128, 128
      %35 = vsyncadd [#allocation6], %s34
      %s37 = sshll.u32 [#allocation5], 4
      %s38 = int_to_ptr.vmem [resolvable:$true] %s37
      %40 = dma.hbm_to_vmem [thread:$0]  %s1, 128, %s38, [#allocation6]
    $region9: #{tpu_custom_call.1} parent=1 // pred_fallthru
      _
    // Predicated region
    $region10: #{tpu_custom_call.1} parent=1 // pred_check
      _
    $region11: #{tpu_custom_call.1} parent=1 // pred_check_branch
      %42 = sbr.rel (0) target = $region13
    $region12: #{tpu_custom_call.1} parent=1 // pred_region
      %s44 = ssub.s32 128, 128
      %45 = vsyncadd [#allocation6], %s44
      %s47 = sshll.u32 [#allocation7], 4
      %s48 = int_to_ptr.vmem [resolvable:$true] %s47
      %50 = dma.hbm_to_vmem [thread:$0]  %s2, 128, %s48, [#allocation6]
    $region13: #{tpu_custom_call.1} parent=1 // pred_fallthru
      _
    // Predicated region
    $region14: #{tpu_custom_call.1} parent=1 // pred_check
      _
    $region15: #{tpu_custom_call.1} parent=1 // pred_check_branch
      %52 = sbr.rel (0) target = $region17
    $region16: #{tpu_custom_call.1} parent=1 // pred_region
      _
    $region17: #{tpu_custom_call.1} parent=1 // pred_fallthru
      _
    // Predicated region
    $region18: #{tpu_custom_call.1} parent=1 // pred_check
      _
    $region19: #{tpu_custom_call.1} parent=1 // pred_check_branch
      %54 = sbr.rel (0) target = $region21
    $region20: #{tpu_custom_call.1} parent=1 // pred_region
      %s56 = ssub.s32 128, 128
      %57 = vsyncadd [#allocation9], %s56
      %s59 = sshll.u32 [#allocation8], 4
      %s60 = int_to_ptr.vmem [resolvable:$true] %s59
      %62 = dma.hbm_to_vmem [thread:$0]  %s4, 128, %s60, [#allocation9]
    $region21: #{tpu_custom_call.1} parent=1 // pred_fallthru
      _
    // Predicated region
    $region22: #{tpu_custom_call.1} parent=1 // pred_check
      _
    $region23: #{tpu_custom_call.1} parent=1 // pred_check_branch
      %64 = sbr.rel (0) target = $region25
    $region24: #{tpu_custom_call.1} parent=1 // pred_region
      _
    $region25: #{tpu_custom_call.1} parent=1 // pred_fallthru
      _
    // Predicated region
    $region26: #{tpu_custom_call.1} parent=1 // pred_check
      _
    $region27: #{tpu_custom_call.1} parent=1 // pred_check_branch
      %66 = sbr.rel (0) target = $region29
    $region28: #{tpu_custom_call.1} parent=1 // pred_region
      %s68 = ssub.s32 128, 128
      %69 = vsyncadd [#allocation9], %s68
      %s71 = sshll.u32 [#allocation10], 4
      %s72 = int_to_ptr.vmem [resolvable:$true] %s71
      %74 = dma.hbm_to_vmem [thread:$0]  %s6, 128, %s72, [#allocation9]
    $region29: #{tpu_custom_call.1} parent=1 // pred_fallthru
      _
    // Predicated region
    $region30: #{tpu_custom_call.1} parent=1 // pred_check
      _
    $region31: #{tpu_custom_call.1} parent=1 // pred_check_branch
      %76 = sbr.rel (0) target = $region33
    $region32: #{tpu_custom_call.1} parent=1 // pred_region
      %s78 = ssub.s32 6400, 6400
      %79 = vsyncadd [#allocation12], %s78
      %s80 = sshll.u32 [#allocation11], 4
      %s81 = int_to_ptr.vmem [resolvable:$true] %s80
      %86 = dma.hbm_to_vmem [thread:$0]  %s7, 6400, %s81, [#allocation12], 128, 128, 8
    $region33: #{tpu_custom_call.1} parent=1 // pred_fallthru
      _
    // Predicated region
    $region34: #{tpu_custom_call.1} parent=1 // pred_check
      _
    $region35: #{tpu_custom_call.1} parent=1 // pred_check_branch
      %88 = sbr.rel (0) target = $region37
    $region36: #{tpu_custom_call.1} parent=1 // pred_region
      _
    $region37: #{tpu_custom_call.1} parent=1 // pred_fallthru
      _
    // Predicated region
    $region38: #{tpu_custom_call.1} parent=1 // pred_check
      _
    $region39: #{tpu_custom_call.1} parent=1 // pred_check_branch
      %90 = sbr.rel (0) target = $region41
    $region40: #{tpu_custom_call.1} parent=1 // pred_region
      %s92 = ssub.s32 2048, 2048
      %93 = vsyncadd [#allocation12], %s92
      %s94 = sshll.u32 [#allocation13], 4
      %s95 = int_to_ptr.vmem [resolvable:$true] %s94
      %100 = dma.hbm_to_vmem [thread:$0]  %s9, 2048, %s95, [#allocation12], 128, 128, 8
    $region41: #{tpu_custom_call.1} parent=1 // pred_fallthru
      _
    // Predicated region
    $region42: #{tpu_custom_call.1} parent=1 // pred_check
      _
    $region43: #{tpu_custom_call.1} parent=1 // pred_check_branch
      %102 = sbr.rel (0) target = $region45
    $region44: #{tpu_custom_call.1} parent=1 // pred_region
      _
    $region45: #{tpu_custom_call.1} parent=1 // pred_fallthru
      _
    // Predicated region
    $region46: #{tpu_custom_call.1} parent=1 // pred_check
      _
    $region47: #{tpu_custom_call.1} parent=1 // pred_check_branch
      %104 = sbr.rel (0) target = $region49
    $region48: #{tpu_custom_call.1} parent=1 // pred_region
      %105 = dma.done [#allocation3], 128
    $region49: #{tpu_custom_call.1} parent=1 // pred_fallthru
      _
    // Predicated region
    $region50: #{tpu_custom_call.1} parent=1 // pred_check
      _
    $region51: #{tpu_custom_call.1} parent=1 // pred_check_branch
      %107 = sbr.rel (0) target = $region53
    $region52: #{tpu_custom_call.1} parent=1 // pred_region
      %108 = dma.done [#allocation6], 128
    $region53: #{tpu_custom_call.1} parent=1 // pred_fallthru
      _
    // Predicated region
    $region54: #{tpu_custom_call.1} parent=1 // pred_check
      _
    $region55: #{tpu_custom_call.1} parent=1 // pred_check_branch
      %110 = sbr.rel (0) target = $region57
    $region56: #{tpu_custom_call.1} parent=1 // pred_region
      %111 = dma.done [#allocation6], 128
    $region57: #{tpu_custom_call.1} parent=1 // pred_fallthru
      _
    // Predicated region
    $region58: #{tpu_custom_call.1} parent=1 // pred_check
      _
    $region59: #{tpu_custom_call.1} parent=1 // pred_check_branch
      %113 = sbr.rel (0) target = $region61
    $region60: #{tpu_custom_call.1} parent=1 // pred_region
      %114 = dma.done [#allocation9], 128
    $region61: #{tpu_custom_call.1} parent=1 // pred_fallthru
      _
    // Predicated region
    $region62: #{tpu_custom_call.1} parent=1 // pred_check
      _
    $region63: #{tpu_custom_call.1} parent=1 // pred_check_branch
      %116 = sbr.rel (0) target = $region65
    $region64: #{tpu_custom_call.1} parent=1 // pred_region
      %117 = dma.done [#allocation9], 128
    $region65: #{tpu_custom_call.1} parent=1 // pred_fallthru
      _
    // Predicated region
    $region66: #{tpu_custom_call.1} parent=1 // pred_check
      _
    $region67: #{tpu_custom_call.1} parent=1 // pred_check_branch
      %119 = sbr.rel (0) target = $region69
    $region68: #{tpu_custom_call.1} parent=1 // pred_region
      %120 = dma.done [#allocation12], 6400
    $region69: #{tpu_custom_call.1} parent=1 // pred_fallthru
      _
    // Predicated region
    $region70: #{tpu_custom_call.1} parent=1 // pred_check
      _
    $region71: #{tpu_custom_call.1} parent=1 // pred_check_branch
      %122 = sbr.rel (0) target = $region73
    $region72: #{tpu_custom_call.1} parent=1 // pred_region
      %123 = dma.done [#allocation12], 2048
    $region73: #{tpu_custom_call.1} parent=1 // pred_fallthru
      _
    %v124 = vld [vmem:[%s8] sm:$0x1]
    %v125 = vld [vmem:[#allocation2] sm:$0xff]
    %v126 = vld [vmem:[#allocation11] sm:$0xff]
    %v127 = vld [vmem:[#allocation11 + $0x8] sm:$0xff]
    %v128 = vld [vmem:[#allocation11 + $0x10] sm:$0xff]
    %v129 = vld [vmem:[#allocation11 + $0x18] sm:$0xff]
    %v130 = vld [vmem:[#allocation11 + $0x20] sm:$0xff]
    %v131 = vld [vmem:[#allocation11 + $0x28] sm:$0xff]
    %v132 = vld [vmem:[#allocation11 + $0x30] sm:$0xff]
    %v133 = vld [vmem:[#allocation11 + $0x38] sm:$0xff]
    %vm134 = vcmask 523264
    %v136 = vsel %vm134, %v125, 0
    %138 = vmatprep.subr.mxu0 0.0
    %139 = vmatpush1.msra.mxu0 %v126
    %140 = vmatprep.subr.mxu0 0.0
    %141 = vmatpush1.msra.mxu0 %v127
    %142 = vmatprep.subr.mxu0 0.0
    %143 = vmatpush1.msra.mxu0 %v128
    %144 = vmatprep.subr.mxu0 0.0
    %145 = vmatpush1.msra.mxu0 %v129
    %146 = vmatprep.subr.mxu0 0.0
    %147 = vmatpush1.msra.mxu0 %v130
    %148 = vmatprep.subr.mxu0 0.0
    %149 = vmatpush1.msra.mxu0 %v131
    %150 = vmatprep.subr.mxu0 0.0
    %151 = vmatpush1.msra.mxu0 %v132
    %152 = vmatprep.subr.mxu0 0.0
    %153 = vmatpush1.msra.mxu0 %v133
    %154 = vmatprep.subr.mxu0 0.0
    %155 = vmatpush1.msra.mxu0 0.0
    %156 = vmatprep.subr.mxu0 0.0
    %157 = vmatpush1.msra.mxu0 0.0
    %158 = vmatprep.subr.mxu0 0.0
    %159 = vmatpush1.msra.mxu0 0.0
    %160 = vmatprep.subr.mxu0 0.0
    %161 = vmatpush1.msra.mxu0 0.0
    %162 = vmatprep.subr.mxu0 0.0
    %163 = vmatpush1.msra.mxu0 0.0
    %164 = vmatprep.subr.mxu0 0.0
    %165 = vmatpush1.msra.mxu0 0.0
    %166 = vmatprep.subr.mxu0 0.0
    %167 = vmatpush1.msra.mxu0 0.0
    %168 = vmatprep.subr.mxu0 0.0
    %169 = vmatpush1.msra.mxu0 0.0
    %170 = vmatprep.subr.mxu0 0.0
    %171 = vmatpush1.msra.mxu0 0.0
    %172 = vmatprep.subr.mxu0 0.0
    %173 = vmatpush1.msra.mxu0 0.0
    %174 = vmatprep.subr.mxu0 0.0
    %175 = vmatpush1.msra.mxu0 0.0
    %176 = vmatprep.subr.mxu0 0.0
    %177 = vmatpush1.msra.mxu0 0.0
    %178 = vmatprep.subr.mxu0 0.0
    %179 = vmatpush1.msra.mxu0 0.0
    %180 = vmatprep.subr.mxu0 0.0
    %181 = vmatpush1.msra.mxu0 0.0
    %182 = vmatprep.subr.mxu0 0.0
    %183 = vmatpush1.msra.mxu0 0.0
    %184 = vmatprep.subr.mxu0 0.0
    %185 = vmatpush1.msra.mxu0 0.0
    %186 = vmatprep.subr.mxu0 0.0
    %187 = vmatpush1.msra.mxu0 0.0
    %188 = vmatprep.subr.mxu0 0.0
    %189 = vmatpush1.msra.mxu0 0.0
    %190 = vmatprep.subr.mxu0 0.0
    %191 = vmatpush1.msra.mxu0 0.0
    %192 = vmatprep.subr.mxu0 0.0
    %193 = vmatpush1.msra.mxu0 0.0
    %194 = vmatprep.subr.mxu0 0.0
    %195 = vmatpush1.msra.mxu0 0.0
    %196 = vmatprep.subr.mxu0 0.0
    %197 = vmatpush1.msra.mxu0 0.0
    %198 = vmatprep.subr.mxu0 0.0
    %199 = vmatpush1.msra.mxu0 0.0
    %200 = vmatprep.subr.mxu0 0.0
    %201 = vmatpush1.msra.mxu0 0.0
    %202 = vmatprep.mubr.f32.mxu0 0.0
    %203 = vmatmul.mubr.f32.gmra.mrb[0].mxu0 %v136
    %v204 = vpop.f32.mrb[0].mxu0
    %v205 = vadd.f32 0.0, %v204
    %v206 = vpop.f32.mrb[0].mxu0
    %207 = vdwg.mxu0
    %v209 = vlaneseq
    %v210 = vshrl.u32 %v209, 7
    %v211 = vsub.s32 0, %v210
    %v212 = vrot.slane %v124, %v211
    %v214 = vadd.f32 %v212, %v205
    %v215 = vld [vmem:[#allocation5] sm:$0xff]
    %v216 = vld [vmem:[#allocation11 + $0x40] sm:$0xff]
    %v217 = vld [vmem:[#allocation11 + $0x48] sm:$0xff]
    %v218 = vld [vmem:[#allocation11 + $0x50] sm:$0xff]
    %v219 = vld [vmem:[#allocation11 + $0x58] sm:$0xff]
    %v220 = vld [vmem:[#allocation11 + $0x60] sm:$0xff]
    %v221 = vld [vmem:[#allocation11 + $0x68] sm:$0xff]
    %v222 = vld [vmem:[#allocation11 + $0x70] sm:$0xff]
    %v223 = vld [vmem:[#allocation11 + $0x78] sm:$0xff]
    %v225 = vsel %vm134, %v215, 0
    %227 = vmatprep.subr.mxu0 0.0
    %228 = vmatpush1.msra.mxu0 %v216
    %229 = vmatprep.subr.mxu0 0.0
    %230 = vmatpush1.msra.mxu0 %v217
    %231 = vmatprep.subr.mxu0 0.0
    %232 = vmatpush1.msra.mxu0 %v218
    %233 = vmatprep.subr.mxu0 0.0
    %234 = vmatpush1.msra.mxu0 %v219
    %235 = vmatprep.subr.mxu0 0.0
    %236 = vmatpush1.msra.mxu0 %v220
    %237 = vmatprep.subr.mxu0 0.0
    %238 = vmatpush1.msra.mxu0 %v221
    %239 = vmatprep.subr.mxu0 0.0
    %240 = vmatpush1.msra.mxu0 %v222
    %241 = vmatprep.subr.mxu0 0.0
    %242 = vmatpush1.msra.mxu0 %v223
    %243 = vmatprep.subr.mxu0 0.0
    %244 = vmatpush1.msra.mxu0 0.0
    %245 = vmatprep.subr.mxu0 0.0
    %246 = vmatpush1.msra.mxu0 0.0
    %247 = vmatprep.subr.mxu0 0.0
    %248 = vmatpush1.msra.mxu0 0.0
    %249 = vmatprep.subr.mxu0 0.0
    %250 = vmatpush1.msra.mxu0 0.0
    %251 = vmatprep.subr.mxu0 0.0
    %252 = vmatpush1.msra.mxu0 0.0
    %253 = vmatprep.subr.mxu0 0.0
    %254 = vmatpush1.msra.mxu0 0.0
    %255 = vmatprep.subr.mxu0 0.0
    %256 = vmatpush1.msra.mxu0 0.0
    %257 = vmatprep.subr.mxu0 0.0
    %258 = vmatpush1.msra.mxu0 0.0
    %259 = vmatprep.subr.mxu0 0.0
    %260 = vmatpush1.msra.mxu0 0.0
    %261 = vmatprep.subr.mxu0 0.0
    %262 = vmatpush1.msra.mxu0 0.0
    %263 = vmatprep.subr.mxu0 0.0
    %264 = vmatpush1.msra.mxu0 0.0
    %265 = vmatprep.subr.mxu0 0.0
    %266 = vmatpush1.msra.mxu0 0.0
    %267 = vmatprep.subr.mxu0 0.0
    %268 = vmatpush1.msra.mxu0 0.0
    %269 = vmatprep.subr.mxu0 0.0
    %270 = vmatpush1.msra.mxu0 0.0
    %271 = vmatprep.subr.mxu0 0.0
    %272 = vmatpush1.msra.mxu0 0.0
    %273 = vmatprep.subr.mxu0 0.0
    %274 = vmatpush1.msra.mxu0 0.0
    %275 = vmatprep.subr.mxu0 0.0
    %276 = vmatpush1.msra.mxu0 0.0
    %277 = vmatprep.subr.mxu0 0.0
    %278 = vmatpush1.msra.mxu0 0.0
    %279 = vmatprep.subr.mxu0 0.0
    %280 = vmatpush1.msra.mxu0 0.0
    %281 = vmatprep.subr.mxu0 0.0
    %282 = vmatpush1.msra.mxu0 0.0
    %283 = vmatprep.subr.mxu0 0.0
    %284 = vmatpush1.msra.mxu0 0.0
    %285 = vmatprep.subr.mxu0 0.0
    %286 = vmatpush1.msra.mxu0 0.0
    %287 = vmatprep.subr.mxu0 0.0
    %288 = vmatpush1.msra.mxu0 0.0
    %289 = vmatprep.subr.mxu0 0.0
    %290 = vmatpush1.msra.mxu0 0.0
    %291 = vmatprep.mubr.f32.mxu0 0.0
    %292 = vmatmul.mubr.f32.gmra.mrb[0].mxu0 %v225
    %v293 = vpop.f32.mrb[0].mxu0
    %v294 = vadd.f32 0.0, %v293
    %v295 = vpop.f32.mrb[0].mxu0
    %296 = vdwg.mxu0
    %v297 = vadd.f32 %v214, %v294
    %v298 = vld [vmem:[#allocation7] sm:$0xff]
    %v299 = vld [vmem:[#allocation11 + $0x80] sm:$0xff]
    %v300 = vld [vmem:[#allocation11 + $0x88] sm:$0xff]
    %v301 = vld [vmem:[#allocation11 + $0x90] sm:$0xff]
    %v302 = vld [vmem:[#allocation11 + $0x98] sm:$0xff]
    %v303 = vld [vmem:[#allocation11 + $0xa0] sm:$0xff]
    %v304 = vld [vmem:[#allocation11 + $0xa8] sm:$0xff]
    %v305 = vld [vmem:[#allocation11 + $0xb0] sm:$0xff]
    %v306 = vld [vmem:[#allocation11 + $0xb8] sm:$0xff]
    %v308 = vsel %vm134, %v298, 0
    %310 = vmatprep.subr.mxu0 0.0
    %311 = vmatpush1.msra.mxu0 %v299
    %312 = vmatprep.subr.mxu0 0.0
    %313 = vmatpush1.msra.mxu0 %v300
    %314 = vmatprep.subr.mxu0 0.0
    %315 = vmatpush1.msra.mxu0 %v301
    %316 = vmatprep.subr.mxu0 0.0
    %317 = vmatpush1.msra.mxu0 %v302
    %318 = vmatprep.subr.mxu0 0.0
    %319 = vmatpush1.msra.mxu0 %v303
    %320 = vmatprep.subr.mxu0 0.0
    %321 = vmatpush1.msra.mxu0 %v304
    %322 = vmatprep.subr.mxu0 0.0
    %323 = vmatpush1.msra.mxu0 %v305
    %324 = vmatprep.subr.mxu0 0.0
    %325 = vmatpush1.msra.mxu0 %v306
    %326 = vmatprep.subr.mxu0 0.0
    %327 = vmatpush1.msra.mxu0 0.0
    %328 = vmatprep.subr.mxu0 0.0
    %329 = vmatpush1.msra.mxu0 0.0
    %330 = vmatprep.subr.mxu0 0.0
    %331 = vmatpush1.msra.mxu0 0.0
    %332 = vmatprep.subr.mxu0 0.0
    %333 = vmatpush1.msra.mxu0 0.0
    %334 = vmatprep.subr.mxu0 0.0
    %335 = vmatpush1.msra.mxu0 0.0
    %336 = vmatprep.subr.mxu0 0.0
    %337 = vmatpush1.msra.mxu0 0.0
    %338 = vmatprep.subr.mxu0 0.0
    %339 = vmatpush1.msra.mxu0 0.0
    %340 = vmatprep.subr.mxu0 0.0
    %341 = vmatpush1.msra.mxu0 0.0
    %342 = vmatprep.subr.mxu0 0.0
    %343 = vmatpush1.msra.mxu0 0.0
    %344 = vmatprep.subr.mxu0 0.0
    %345 = vmatpush1.msra.mxu0 0.0
    %346 = vmatprep.subr.mxu0 0.0
    %347 = vmatpush1.msra.mxu0 0.0
    %348 = vmatprep.subr.mxu0 0.0
    %349 = vmatpush1.msra.mxu0 0.0
    %350 = vmatprep.subr.mxu0 0.0
    %351 = vmatpush1.msra.mxu0 0.0
    %352 = vmatprep.subr.mxu0 0.0
    %353 = vmatpush1.msra.mxu0 0.0
    %354 = vmatprep.subr.mxu0 0.0
    %355 = vmatpush1.msra.mxu0 0.0
    %356 = vmatprep.subr.mxu0 0.0
    %357 = vmatpush1.msra.mxu0 0.0
    %358 = vmatprep.subr.mxu0 0.0
    %359 = vmatpush1.msra.mxu0 0.0
    %360 = vmatprep.subr.mxu0 0.0
    %361 = vmatpush1.msra.mxu0 0.0
    %362 = vmatprep.subr.mxu0 0.0
    %363 = vmatpush1.msra.mxu0 0.0
    %364 = vmatprep.subr.mxu0 0.0
    %365 = vmatpush1.msra.mxu0 0.0
    %366 = vmatprep.subr.mxu0 0.0
    %367 = vmatpush1.msra.mxu0 0.0
    %368 = vmatprep.subr.mxu0 0.0
    %369 = vmatpush1.msra.mxu0 0.0
    %370 = vmatprep.subr.mxu0 0.0
    %371 = vmatpush1.msra.mxu0 0.0
    %372 = vmatprep.subr.mxu0 0.0
    %373 = vmatpush1.msra.mxu0 0.0
    %374 = vmatprep.mubr.f32.mxu0 0.0
    %375 = vmatmul.mubr.f32.gmra.mrb[0].mxu0 %v308
    %v376 = vpop.f32.mrb[0].mxu0
    %v377 = vadd.f32 0.0, %v376
    %v378 = vpop.f32.mrb[0].mxu0
    %379 = vdwg.mxu0
    %v380 = vadd.f32 %v297, %v377
    %v381 = vld [vmem:[%s3] sm:$0xff]
    %v382 = vld [vmem:[#allocation11 + $0xc0] sm:$0xff]
    %v383 = vld [vmem:[#allocation11 + $0xc8] sm:$0xff]
    %v384 = vld [vmem:[#allocation11 + $0xd0] sm:$0xff]
    %v385 = vld [vmem:[#allocation11 + $0xd8] sm:$0xff]
    %v386 = vld [vmem:[#allocation11 + $0xe0] sm:$0xff]
    %v387 = vld [vmem:[#allocation11 + $0xe8] sm:$0xff]
    %v388 = vld [vmem:[#allocation11 + $0xf0] sm:$0xff]
    %v389 = vld [vmem:[#allocation11 + $0xf8] sm:$0xff]
    %v391 = vsel %vm134, %v381, 0
    %393 = vmatprep.subr.mxu0 0.0
    %394 = vmatpush1.msra.mxu0 %v382
    %395 = vmatprep.subr.mxu0 0.0
    %396 = vmatpush1.msra.mxu0 %v383
    %397 = vmatprep.subr.mxu0 0.0
    %398 = vmatpush1.msra.mxu0 %v384
    %399 = vmatprep.subr.mxu0 0.0
    %400 = vmatpush1.msra.mxu0 %v385
    %401 = vmatprep.subr.mxu0 0.0
    %402 = vmatpush1.msra.mxu0 %v386
    %403 = vmatprep.subr.mxu0 0.0
    %404 = vmatpush1.msra.mxu0 %v387
    %405 = vmatprep.subr.mxu0 0.0
    %406 = vmatpush1.msra.mxu0 %v388
    %407 = vmatprep.subr.mxu0 0.0
    %408 = vmatpush1.msra.mxu0 %v389
    %409 = vmatprep.subr.mxu0 0.0
    %410 = vmatpush1.msra.mxu0 0.0
    %411 = vmatprep.subr.mxu0 0.0
    %412 = vmatpush1.msra.mxu0 0.0
    %413 = vmatprep.subr.mxu0 0.0
    %414 = vmatpush1.msra.mxu0 0.0
    %415 = vmatprep.subr.mxu0 0.0
    %416 = vmatpush1.msra.mxu0 0.0
    %417 = vmatprep.subr.mxu0 0.0
    %418 = vmatpush1.msra.mxu0 0.0
    %419 = vmatprep.subr.mxu0 0.0
    %420 = vmatpush1.msra.mxu0 0.0
    %421 = vmatprep.subr.mxu0 0.0
    %422 = vmatpush1.msra.mxu0 0.0
    %423 = vmatprep.subr.mxu0 0.0
    %424 = vmatpush1.msra.mxu0 0.0
    %425 = vmatprep.subr.mxu0 0.0
    %426 = vmatpush1.msra.mxu0 0.0
    %427 = vmatprep.subr.mxu0 0.0
    %428 = vmatpush1.msra.mxu0 0.0
    %429 = vmatprep.subr.mxu0 0.0
    %430 = vmatpush1.msra.mxu0 0.0
    %431 = vmatprep.subr.mxu0 0.0
    %432 = vmatpush1.msra.mxu0 0.0
    %433 = vmatprep.subr.mxu0 0.0
    %434 = vmatpush1.msra.mxu0 0.0
    %435 = vmatprep.subr.mxu0 0.0
    %436 = vmatpush1.msra.mxu0 0.0
    %437 = vmatprep.subr.mxu0 0.0
    %438 = vmatpush1.msra.mxu0 0.0
    %439 = vmatprep.subr.mxu0 0.0
    %440 = vmatpush1.msra.mxu0 0.0
    %441 = vmatprep.subr.mxu0 0.0
    %442 = vmatpush1.msra.mxu0 0.0
    %443 = vmatprep.subr.mxu0 0.0
    %444 = vmatpush1.msra.mxu0 0.0
    %445 = vmatprep.subr.mxu0 0.0
    %446 = vmatpush1.msra.mxu0 0.0
    %447 = vmatprep.subr.mxu0 0.0
    %448 = vmatpush1.msra.mxu0 0.0
    %449 = vmatprep.subr.mxu0 0.0
    %450 = vmatpush1.msra.mxu0 0.0
    %451 = vmatprep.subr.mxu0 0.0
    %452 = vmatpush1.msra.mxu0 0.0
    %453 = vmatprep.subr.mxu0 0.0
    %454 = vmatpush1.msra.mxu0 0.0
    %455 = vmatprep.subr.mxu0 0.0
    %456 = vmatpush1.msra.mxu0 0.0
    %457 = vmatprep.mubr.f32.mxu0 0.0
    %458 = vmatmul.mubr.f32.gmra.mrb[0].mxu0 %v391
    %v459 = vpop.f32.mrb[0].mxu0
    %v460 = vadd.f32 0.0, %v459
    %v461 = vpop.f32.mrb[0].mxu0
    %462 = vdwg.mxu0
    %v463 = vadd.f32 %v380, %v460
    %v464 = vld [vmem:[#allocation8] sm:$0xff]
    %v465 = vld [vmem:[#allocation11 + $0x100] sm:$0xff]
    %v466 = vld [vmem:[#allocation11 + $0x108] sm:$0xff]
    %v467 = vld [vmem:[#allocation11 + $0x110] sm:$0xff]
    %v468 = vld [vmem:[#allocation11 + $0x118] sm:$0xff]
    %v469 = vld [vmem:[#allocation11 + $0x120] sm:$0xff]
    %v470 = vld [vmem:[#allocation11 + $0x128] sm:$0xff]
    %vm471 = vcmask 392192
    %v473 = vsel %vm471, %v464, 0
    %475 = vmatprep.subr.mxu0 0.0
    %476 = vmatpush1.msra.mxu0 %v465
    %477 = vmatprep.subr.mxu0 0.0
    %478 = vmatpush1.msra.mxu0 %v466
    %479 = vmatprep.subr.mxu0 0.0
    %480 = vmatpush1.msra.mxu0 %v467
    %481 = vmatprep.subr.mxu0 0.0
    %482 = vmatpush1.msra.mxu0 %v468
    %483 = vmatprep.subr.mxu0 0.0
    %484 = vmatpush1.msra.mxu0 %v469
    %485 = vmatprep.subr.mxu0 0.0
    %486 = vmatpush1.msra.mxu0 %v470
    %487 = vmatprep.subr.mxu0 0.0
    %488 = vmatpush1.msra.mxu0 0.0
    %489 = vmatprep.subr.mxu0 0.0
    %490 = vmatpush1.msra.mxu0 0.0
    %491 = vmatprep.subr.mxu0 0.0
    %492 = vmatpush1.msra.mxu0 0.0
    %493 = vmatprep.subr.mxu0 0.0
    %494 = vmatpush1.msra.mxu0 0.0
    %495 = vmatprep.subr.mxu0 0.0
    %496 = vmatpush1.msra.mxu0 0.0
    %497 = vmatprep.subr.mxu0 0.0
    %498 = vmatpush1.msra.mxu0 0.0
    %499 = vmatprep.subr.mxu0 0.0
    %500 = vmatpush1.msra.mxu0 0.0
    %501 = vmatprep.subr.mxu0 0.0
    %502 = vmatpush1.msra.mxu0 0.0
    %503 = vmatprep.subr.mxu0 0.0
    %504 = vmatpush1.msra.mxu0 0.0
    %505 = vmatprep.subr.mxu0 0.0
    %506 = vmatpush1.msra.mxu0 0.0
    %507 = vmatprep.subr.mxu0 0.0
    %508 = vmatpush1.msra.mxu0 0.0
    %509 = vmatprep.subr.mxu0 0.0
    %510 = vmatpush1.msra.mxu0 0.0
    %511 = vmatprep.subr.mxu0 0.0
    %512 = vmatpush1.msra.mxu0 0.0
    %513 = vmatprep.subr.mxu0 0.0
    %514 = vmatpush1.msra.mxu0 0.0
    %515 = vmatprep.subr.mxu0 0.0
    %516 = vmatpush1.msra.mxu0 0.0
    %517 = vmatprep.subr.mxu0 0.0
    %518 = vmatpush1.msra.mxu0 0.0
    %519 = vmatprep.subr.mxu0 0.0
    %520 = vmatpush1.msra.mxu0 0.0
    %521 = vmatprep.subr.mxu0 0.0
    %522 = vmatpush1.msra.mxu0 0.0
    %523 = vmatprep.subr.mxu0 0.0
    %524 = vmatpush1.msra.mxu0 0.0
    %525 = vmatprep.subr.mxu0 0.0
    %526 = vmatpush1.msra.mxu0 0.0
    %527 = vmatprep.subr.mxu0 0.0
    %528 = vmatpush1.msra.mxu0 0.0
    %529 = vmatprep.subr.mxu0 0.0
    %530 = vmatpush1.msra.mxu0 0.0
    %531 = vmatprep.subr.mxu0 0.0
    %532 = vmatpush1.msra.mxu0 0.0
    %533 = vmatprep.subr.mxu0 0.0
    %534 = vmatpush1.msra.mxu0 0.0
    %535 = vmatprep.subr.mxu0 0.0
    %536 = vmatpush1.msra.mxu0 0.0
    %537 = vmatprep.subr.mxu0 0.0
    %538 = vmatpush1.msra.mxu0 0.0
    %539 = vmatprep.mubr.f32.mxu0 0.0
    %540 = vmatmul.mubr.f32.gmra.mrb[0].mxu0 %v473
    %v541 = vpop.f32.mrb[0].mxu0
    %v542 = vadd.f32 0.0, %v541
    %v543 = vpop.f32.mrb[0].mxu0
    %544 = vdwg.mxu0
    %v545 = vadd.f32 %v463, %v542
    %v546 = vld [vmem:[%s5] sm:$0xff]
    %v547 = vld [vmem:[#allocation11 + $0x130] sm:$0xff]
    %v548 = vld [vmem:[#allocation11 + $0x138] sm:$0xff]
    %v549 = vld [vmem:[#allocation11 + $0x140] sm:$0xff]
    %v550 = vld [vmem:[#allocation11 + $0x148] sm:$0xff]
    %v551 = vld [vmem:[#allocation11 + $0x150] sm:$0xff]
    %v552 = vld [vmem:[#allocation11 + $0x158] sm:$0xff]
    %v554 = vsel %vm471, %v546, 0
    %556 = vmatprep.subr.mxu0 0.0
    %557 = vmatpush1.msra.mxu0 %v547
    %558 = vmatprep.subr.mxu0 0.0
    %559 = vmatpush1.msra.mxu0 %v548
    %560 = vmatprep.subr.mxu0 0.0
    %561 = vmatpush1.msra.mxu0 %v549
    %562 = vmatprep.subr.mxu0 0.0
    %563 = vmatpush1.msra.mxu0 %v550
    %564 = vmatprep.subr.mxu0 0.0
    %565 = vmatpush1.msra.mxu0 %v551
    %566 = vmatprep.subr.mxu0 0.0
    %567 = vmatpush1.msra.mxu0 %v552
    %568 = vmatprep.subr.mxu0 0.0
    %569 = vmatpush1.msra.mxu0 0.0
    %570 = vmatprep.subr.mxu0 0.0
    %571 = vmatpush1.msra.mxu0 0.0
    %572 = vmatprep.subr.mxu0 0.0
    %573 = vmatpush1.msra.mxu0 0.0
    %574 = vmatprep.subr.mxu0 0.0
    %575 = vmatpush1.msra.mxu0 0.0
    %576 = vmatprep.subr.mxu0 0.0
    %577 = vmatpush1.msra.mxu0 0.0
    %578 = vmatprep.subr.mxu0 0.0
    %579 = vmatpush1.msra.mxu0 0.0
    %580 = vmatprep.subr.mxu0 0.0
    %581 = vmatpush1.msra.mxu0 0.0
    %582 = vmatprep.subr.mxu0 0.0
    %583 = vmatpush1.msra.mxu0 0.0
    %584 = vmatprep.subr.mxu0 0.0
    %585 = vmatpush1.msra.mxu0 0.0
    %586 = vmatprep.subr.mxu0 0.0
    %587 = vmatpush1.msra.mxu0 0.0
    %588 = vmatprep.subr.mxu0 0.0
    %589 = vmatpush1.msra.mxu0 0.0
    %590 = vmatprep.subr.mxu0 0.0
    %591 = vmatpush1.msra.mxu0 0.0
    %592 = vmatprep.subr.mxu0 0.0
    %593 = vmatpush1.msra.mxu0 0.0
    %594 = vmatprep.subr.mxu0 0.0
    %595 = vmatpush1.msra.mxu0 0.0
    %596 = vmatprep.subr.mxu0 0.0
    %597 = vmatpush1.msra.mxu0 0.0
    %598 = vmatprep.subr.mxu0 0.0
    %599 = vmatpush1.msra.mxu0 0.0
    %600 = vmatprep.subr.mxu0 0.0
    %601 = vmatpush1.msra.mxu0 0.0
    %602 = vmatprep.subr.mxu0 0.0
    %603 = vmatpush1.msra.mxu0 0.0
    %604 = vmatprep.subr.mxu0 0.0
    %605 = vmatpush1.msra.mxu0 0.0
    %606 = vmatprep.subr.mxu0 0.0
    %607 = vmatpush1.msra.mxu0 0.0
    %608 = vmatprep.subr.mxu0 0.0
    %609 = vmatpush1.msra.mxu0 0.0
    %610 = vmatprep.subr.mxu0 0.0
    %611 = vmatpush1.msra.mxu0 0.0
    %612 = vmatprep.subr.mxu0 0.0
    %613 = vmatpush1.msra.mxu0 0.0
    %614 = vmatprep.subr.mxu0 0.0
    %615 = vmatpush1.msra.mxu0 0.0
    %616 = vmatprep.subr.mxu0 0.0
    %617 = vmatpush1.msra.mxu0 0.0
    %618 = vmatprep.subr.mxu0 0.0
    %619 = vmatpush1.msra.mxu0 0.0
    %620 = vmatprep.mubr.f32.mxu0 0.0
    %621 = vmatmul.mubr.f32.gmra.mrb[0].mxu0 %v554
    %v622 = vpop.f32.mrb[0].mxu0
    %v623 = vadd.f32 0.0, %v622
    %v624 = vpop.f32.mrb[0].mxu0
    %625 = vdwg.mxu0
    %v626 = vadd.f32 %v545, %v623
    %v627 = vld [vmem:[#allocation10] sm:$0xff]
    %v628 = vld [vmem:[#allocation11 + $0x160] sm:$0xff]
    %v629 = vld [vmem:[#allocation11 + $0x168] sm:$0xff]
    %v630 = vld [vmem:[#allocation11 + $0x170] sm:$0xff]
    %v631 = vld [vmem:[#allocation11 + $0x178] sm:$0xff]
    %v632 = vld [vmem:[#allocation11 + $0x180] sm:$0xff]
    %v633 = vld [vmem:[#allocation11 + $0x188] sm:$0xff]
    %v635 = vsel %vm471, %v627, 0
    %637 = vmatprep.subr.mxu0 0.0
    %638 = vmatpush1.msra.mxu0 %v628
    %639 = vmatprep.subr.mxu0 0.0
    %640 = vmatpush1.msra.mxu0 %v629
    %641 = vmatprep.subr.mxu0 0.0
    %642 = vmatpush1.msra.mxu0 %v630
    %643 = vmatprep.subr.mxu0 0.0
    %644 = vmatpush1.msra.mxu0 %v631
    %645 = vmatprep.subr.mxu0 0.0
    %646 = vmatpush1.msra.mxu0 %v632
    %647 = vmatprep.subr.mxu0 0.0
    %648 = vmatpush1.msra.mxu0 %v633
    %649 = vmatprep.subr.mxu0 0.0
    %650 = vmatpush1.msra.mxu0 0.0
    %651 = vmatprep.subr.mxu0 0.0
    %652 = vmatpush1.msra.mxu0 0.0
    %653 = vmatprep.subr.mxu0 0.0
    %654 = vmatpush1.msra.mxu0 0.0
    %655 = vmatprep.subr.mxu0 0.0
    %656 = vmatpush1.msra.mxu0 0.0
    %657 = vmatprep.subr.mxu0 0.0
    %658 = vmatpush1.msra.mxu0 0.0
    %659 = vmatprep.subr.mxu0 0.0
    %660 = vmatpush1.msra.mxu0 0.0
    %661 = vmatprep.subr.mxu0 0.0
    %662 = vmatpush1.msra.mxu0 0.0
    %663 = vmatprep.subr.mxu0 0.0
    %664 = vmatpush1.msra.mxu0 0.0
    %665 = vmatprep.subr.mxu0 0.0
    %666 = vmatpush1.msra.mxu0 0.0
    %667 = vmatprep.subr.mxu0 0.0
    %668 = vmatpush1.msra.mxu0 0.0
    %669 = vmatprep.subr.mxu0 0.0
    %670 = vmatpush1.msra.mxu0 0.0
    %671 = vmatprep.subr.mxu0 0.0
    %672 = vmatpush1.msra.mxu0 0.0
    %673 = vmatprep.subr.mxu0 0.0
    %674 = vmatpush1.msra.mxu0 0.0
    %675 = vmatprep.subr.mxu0 0.0
    %676 = vmatpush1.msra.mxu0 0.0
    %677 = vmatprep.subr.mxu0 0.0
    %678 = vmatpush1.msra.mxu0 0.0
    %679 = vmatprep.subr.mxu0 0.0
    %680 = vmatpush1.msra.mxu0 0.0
    %681 = vmatprep.subr.mxu0 0.0
    %682 = vmatpush1.msra.mxu0 0.0
    %683 = vmatprep.subr.mxu0 0.0
    %684 = vmatpush1.msra.mxu0 0.0
    %685 = vmatprep.subr.mxu0 0.0
    %686 = vmatpush1.msra.mxu0 0.0
    %687 = vmatprep.subr.mxu0 0.0
    %688 = vmatpush1.msra.mxu0 0.0
    %689 = vmatprep.subr.mxu0 0.0
    %690 = vmatpush1.msra.mxu0 0.0
    %691 = vmatprep.subr.mxu0 0.0
    %692 = vmatpush1.msra.mxu0 0.0
    %693 = vmatprep.subr.mxu0 0.0
    %694 = vmatpush1.msra.mxu0 0.0
    %695 = vmatprep.subr.mxu0 0.0
    %696 = vmatpush1.msra.mxu0 0.0
    %697 = vmatprep.subr.mxu0 0.0
    %698 = vmatpush1.msra.mxu0 0.0
    %699 = vmatprep.subr.mxu0 0.0
    %700 = vmatpush1.msra.mxu0 0.0
    %701 = vmatprep.mubr.f32.mxu0 0.0
    %702 = vmatmul.mubr.f32.gmra.mrb[0].mxu0 %v635
    %v703 = vpop.f32.mrb[0].mxu0
    %v704 = vadd.f32 0.0, %v703
    %v705 = vpop.f32.mrb[0].mxu0
    %706 = vdwg.mxu0
    %v707 = vadd.f32 %v626, %v704
    %v708 = vxor.u32 %v707, 2147483648
    %v709 = vmul.f32 %v708, 1.442695
    %v710 = vpow.pop %v709
    %v711 = vadd.f32 %v710, 1.0
    %v712 = vrcp.pop %v711
    %v713 = vmul.f32 1.0, %v712
    %v714 = vtanh.pop %v707
    %715 = vrot.lane.b32.xlu0 %v714, 64
    %v716 = vpop.permute.xlu0 %715
    %717 = vrot.lane.b32.xlu0 %v713, 32
    %v718 = vpop.permute.xlu0 %717
    %v719 = vmul.f32 %v713, %v716
    %v720 = vtanh.pop %v719
    %v721 = vmul.f32 %v718, %v720
    %v722 = vld [vmem:[#allocation13] sm:$0xff]
    %v723 = vld [vmem:[#allocation13 + $0x8] sm:$0xff]
    %v724 = vld [vmem:[#allocation13 + $0x10] sm:$0xff]
    %v725 = vld [vmem:[#allocation13 + $0x18] sm:$0xff]
    %v726 = vld [vmem:[#allocation13 + $0x20] sm:$0xff]
    %v727 = vld [vmem:[#allocation13 + $0x28] sm:$0xff]
    %v728 = vld [vmem:[#allocation13 + $0x30] sm:$0xff]
    %v729 = vld [vmem:[#allocation13 + $0x38] sm:$0xff]
    %v730 = vld [vmem:[#allocation13 + $0x40] sm:$0xff]
    %v731 = vld [vmem:[#allocation13 + $0x48] sm:$0xff]
    %v732 = vld [vmem:[#allocation13 + $0x50] sm:$0xff]
    %v733 = vld [vmem:[#allocation13 + $0x58] sm:$0xff]
    %v734 = vld [vmem:[#allocation13 + $0x60] sm:$0xff]
    %v735 = vld [vmem:[#allocation13 + $0x68] sm:$0xff]
    %v736 = vld [vmem:[#allocation13 + $0x70] sm:$0xff]
    %v737 = vld [vmem:[#allocation13 + $0x78] sm:$0xff]
    %v738 = vld [vmem:[%s10] sm:$0x1]
    %v740 = vlaneseq
    %v741 = vshrl.u32 %v740, 7
    %v742 = vsub.s32 0, %v741
    %v743 = vrot.slane %v738, %v742
    %745 = vmatprep.subr.mxu0 0.0
    %746 = vmatpush1.msra.mxu0 %v722
    %747 = vmatprep.subr.mxu0 0.0
    %748 = vmatpush1.msra.mxu0 %v723
    %749 = vmatprep.subr.mxu0 0.0
    %750 = vmatpush1.msra.mxu0 %v724
    %751 = vmatprep.subr.mxu0 0.0
    %752 = vmatpush1.msra.mxu0 %v725
    %753 = vmatprep.subr.mxu0 0.0
    %754 = vmatpush1.msra.mxu0 %v726
    %755 = vmatprep.subr.mxu0 0.0
    %756 = vmatpush1.msra.mxu0 %v727
    %757 = vmatprep.subr.mxu0 0.0
    %758 = vmatpush1.msra.mxu0 %v728
    %759 = vmatprep.subr.mxu0 0.0
    %760 = vmatpush1.msra.mxu0 %v729
    %761 = vmatprep.subr.mxu0 0.0
    %762 = vmatpush1.msra.mxu0 %v730
    %763 = vmatprep.subr.mxu0 0.0
    %764 = vmatpush1.msra.mxu0 %v731
    %765 = vmatprep.subr.mxu0 0.0
    %766 = vmatpush1.msra.mxu0 %v732
    %767 = vmatprep.subr.mxu0 0.0
    %768 = vmatpush1.msra.mxu0 %v733
    %769 = vmatprep.subr.mxu0 0.0
    %770 = vmatpush1.msra.mxu0 %v734
    %771 = vmatprep.subr.mxu0 0.0
    %772 = vmatpush1.msra.mxu0 %v735
    %773 = vmatprep.subr.mxu0 0.0
    %774 = vmatpush1.msra.mxu0 %v736
    %775 = vmatprep.subr.mxu0 0.0
    %776 = vmatpush1.msra.mxu0 %v737
    %777 = vmatprep.subr.mxu0 0.0
    %778 = vmatpush1.msra.mxu0 0.0
    %779 = vmatprep.subr.mxu0 0.0
    %780 = vmatpush1.msra.mxu0 0.0
    %781 = vmatprep.subr.mxu0 0.0
    %782 = vmatpush1.msra.mxu0 0.0
    %783 = vmatprep.subr.mxu0 0.0
    %784 = vmatpush1.msra.mxu0 0.0
    %785 = vmatprep.subr.mxu0 0.0
    %786 = vmatpush1.msra.mxu0 0.0
    %787 = vmatprep.subr.mxu0 0.0
    %788 = vmatpush1.msra.mxu0 0.0
    %789 = vmatprep.subr.mxu0 0.0
    %790 = vmatpush1.msra.mxu0 0.0
    %791 = vmatprep.subr.mxu0 0.0
    %792 = vmatpush1.msra.mxu0 0.0
    %793 = vmatprep.subr.mxu0 0.0
    %794 = vmatpush1.msra.mxu0 0.0
    %795 = vmatprep.subr.mxu0 0.0
    %796 = vmatpush1.msra.mxu0 0.0
    %797 = vmatprep.subr.mxu0 0.0
    %798 = vmatpush1.msra.mxu0 0.0
    %799 = vmatprep.subr.mxu0 0.0
    %800 = vmatpush1.msra.mxu0 0.0
    %801 = vmatprep.subr.mxu0 0.0
    %802 = vmatpush1.msra.mxu0 0.0
    %803 = vmatprep.subr.mxu0 0.0
    %804 = vmatpush1.msra.mxu0 0.0
    %805 = vmatprep.subr.mxu0 0.0
    %806 = vmatpush1.msra.mxu0 0.0
    %807 = vmatprep.subr.mxu0 0.0
    %808 = vmatpush1.msra.mxu0 0.0
    %809 = vmatprep.mubr.f32.mxu0 0.0
    %810 = vmatmul.mubr.f32.gmra.mrb[0].mxu0 %v721
    %v811 = vpop.f32.mrb[0].mxu0
    %v812 = vadd.f32 %v743, %v811
    %v813 = vpop.f32.mrb[0].mxu0
    %814 = vdwg.mxu0
    %815 = vst [vmem:[#allocation14] sm:$0xff] %v812
    // Predicated region
    $region74: #{tpu_custom_call.1} parent=1 // pred_check
      _
    $region75: #{tpu_custom_call.1} parent=1 // pred_check_branch
      %817 = sbr.rel (0) target = $region77
    $region76: #{tpu_custom_call.1} parent=1 // pred_region
      %s819 = ssub.s32 128, 128
      %820 = vsyncadd [#allocation4], %s819
      %s822 = sshll.u32 [#allocation14], 4
      %s823 = int_to_ptr.vmem [resolvable:$true] %s822
      %825 = dma.vmem_to_hbm [thread:$0]  %s823, 128, %s11, [#allocation4]
    $region77: #{tpu_custom_call.1} parent=1 // pred_fallthru
      _
    // Predicated region
    $region78: #{tpu_custom_call.1} parent=1 // pred_check
      _
    $region79: #{tpu_custom_call.1} parent=1 // pred_check_branch
      %827 = sbr.rel (0) target = $region81
    $region80: #{tpu_custom_call.1} parent=1 // pred_region
      %828 = dma.done [#allocation4], 128
    $region81: #{tpu_custom_call.1} parent=1 // pred_fallthru
      _
    %829 = vsyncpa [#allocation3], 1
    %830 = vsyncpa [#allocation6], 1
    %831 = vsyncpa [#allocation9], 1
    %832 = vsyncpa [#allocation12], 1
    %833 = vsyncpa [#allocation4], 1

</llo_original>
